<compile_context>
chip_gen: v6e
topology: v6e:2x2x1
jax: 0.10.0
libtpu: 0.0.40
codegen_flags: <defaults>
</compile_context>

<pallas_src>
import functools

import jax
import jax.numpy as jnp
from jax.experimental import pallas as pl
from jax.experimental.pallas import tpu as pltpu


# ----------------------------- HW-aware sizing -----------------------------

def _vmem_capacity_bytes():
    try:
        info = pltpu.get_tpu_info()
        cap = getattr(info, "vmem_capacity_bytes", None)
        if cap:
            return int(cap)
    except Exception:
        pass
    return 64 * 1024 * 1024   # conservative default (v7x per-TensorCore)


_VMEM_CAP = _vmem_capacity_bytes()
# row-tile target: 512 on 128 MiB parts (v5e/v6e), 256 on 64 MiB parts (v7x)
ROW_TILE = 512 if _VMEM_CAP >= 96 * 1024 * 1024 else 256
# explicit scoped-VMEM limit with headroom
VMEM_LIMIT = min(int(_VMEM_CAP * 3 // 4), 96 * 1024 * 1024)


def _round_up(n, m):
    return ((n + m - 1) // m) * m


def _pad_rows(x2d, mult):
    """Pad the leading (row) dim up to a multiple of `mult`; return (padded, n)."""
    n = x2d.shape[0]
    pad = (-n) % mult
    if pad:
        x2d = jnp.pad(x2d, ((0, pad), (0, 0)))
    return x2d, n


def _pick_divisor_tile(n, target, granule):
    """Largest divisor of n that is <= target and a multiple of granule, else n."""
    if n <= target:
        return n
    t = (target // granule) * granule
    while t >= granule:
        if n % t == 0:
            return t
        t -= granule
    return n


# ----------------------------- Pallas kernels -----------------------------

def ln_linear_kernel(x_ref, g_ref, b_ref, w_ref, bias_ref, o_ref, *, eps):
    """LayerNorm (f32) fused with a bf16-MXU linear projection."""
    x = x_ref[...].astype(jnp.float32)
    mean = jnp.mean(x, axis=-1, keepdims=True)
    var = jnp.mean((x - mean) ** 2, axis=-1, keepdims=True)
    xn = (x - mean) * jax.lax.rsqrt(var + eps) * g_ref[...] + b_ref[...]
    o_ref[...] = (jnp.dot(xn.astype(w_ref.dtype), w_ref[...],
                          preferred_element_type=jnp.float32)
                  + bias_ref[...]).astype(o_ref.dtype)


def kv_kernel(g_ref, wk_ref, bk_ref, wv_ref, bv_ref, k_ref, v_ref):
    """K and V projections fused: the graph tile is read from HBM once."""
    g = g_ref[...].astype(wk_ref.dtype)          # bf16 for the MXU
    k_ref[...] = (jnp.dot(g, wk_ref[...], preferred_element_type=jnp.float32)
                  + bk_ref[...]).astype(k_ref.dtype)
    v_ref[...] = (jnp.dot(g, wv_ref[...], preferred_element_type=jnp.float32)
                  + bv_ref[...]).astype(v_ref.dtype)


def attention_kernel(q_ref, k_ref, v_ref, m_ref, wo_ref, bo_ref, x_ref,
                     o_ref, attn_ref, ctx_ref, *, heads, scale):
    """Multi-head cross attention for one (batch, q-tile) grid point.

    q_ref: (tq, D) bf16, k_ref/v_ref: (Sk, D) bf16, m_ref: (1, 1, Sk) f32 key mask,
    wo_ref: (D, D) bf16, bo_ref: (1, D) f32, x_ref: (tq, D) f32 residual,
    o_ref: (tq, D) f32, attn_ref: (1, H, tq, Sk) f32, ctx_ref: (tq, D) f32 scratch.
    """
    tq, D = q_ref.shape
    dk = D // heads

    q = q_ref[...]
    k = k_ref[...]
    v = v_ref[...]

    keep = m_ref[...]                                          # (1, 1, Sk) f32
    bias = jnp.where(keep[0] > 0.0,
                     jnp.float32(0.0), jnp.float32(-1e9))      # (1, Sk) f32

    for h in range(heads):
        lo = h * dk
        qh = q[:, lo:lo + dk]                                  # (tq, dk) bf16
        kh = k[:, lo:lo + dk]                                  # (Sk, dk) bf16
        vh = v[:, lo:lo + dk]                                  # (Sk, dk) bf16

        # contract last dims directly (no .T relayout of the K tile)
        s = jax.lax.dot_general(qh, kh, (((1,), (1,)), ((), ())),
                                preferred_element_type=jnp.float32)
        s = s * scale + bias                                   # (tq, Sk) f32

        mx = jnp.max(s, axis=-1, keepdims=True)
        e = jnp.exp(s - mx)
        # exact reciprocal: these probabilities are returned to the caller
        p = e * pl.reciprocal(jnp.sum(e, axis=-1, keepdims=True), approx=False)
        attn_ref[0, h] = p.astype(attn_ref.dtype)

        # per-head context goes into its dk-column slice of the VMEM scratch
        ctx_ref[:, lo:lo + dk] = jnp.dot(p.astype(v.dtype), vh,
                                         preferred_element_type=jnp.float32)

    # ONE full-width (K = D) output projection + bias + residual
    ctx = ctx_ref[...].astype(wo_ref.dtype)
    o_ref[...] = (jnp.dot(ctx, wo_ref[...], preferred_element_type=jnp.float32)
                  + bo_ref[...] + x_ref[...]).astype(o_ref.dtype)


def ffn_kernel(x_ref, g_ref, bln_ref, w1_ref, b1_ref, w2_ref, b2_ref,
               o_ref, xn_ref, acc_ref, *, eps):
    """Fused PositionwiseFeedForward: LN -> W1 -> ReLU -> W2 -> +residual.

    Grid axis 1 tiles d_ff (reduction); when d_ff fits VMEM the axis has a
    single step and W1/W2 stay resident across all row tiles.
    """
    f = pl.program_id(1)

    @pl.when(f == 0)
    def _():
        x = x_ref[...].astype(jnp.float32)
        mean = jnp.mean(x, axis=-1, keepdims=True)
        var = jnp.mean((x - mean) ** 2, axis=-1, keepdims=True)
        xn = (x - mean) * jax.lax.rsqrt(var + eps) * g_ref[...] + bln_ref[...]
        xn_ref[...] = xn.astype(xn_ref.dtype)          # bf16 cache
        acc_ref[...] = jnp.zeros_like(acc_ref)

    h = jnp.dot(xn_ref[...], w1_ref[...],
                preferred_element_type=jnp.float32) + b1_ref[...]
    h = jnp.maximum(h, 0.0).astype(w2_ref.dtype)       # bf16 for the second MXU pass
    acc_ref[...] += jnp.dot(h, w2_ref[...], preferred_element_type=jnp.float32)

    @pl.when(f == pl.num_programs(1) - 1)
    def _():
        o_ref[...] = (acc_ref[...] + b2_ref[...]
                      + x_ref[...].astype(jnp.float32)).astype(o_ref.dtype)


# ----------------------------- Pallas wrappers -----------------------------

def pallas_ln_linear(x2d, g, bln, w_bf16, b, eps=1e-6, out_dtype=jnp.bfloat16):
    N, D = x2d.shape
    Dout = w_bf16.shape[1]
    tm = min(ROW_TILE, _round_up(N, 8))
    xp, n0 = _pad_rows(x2d, tm)
    Np = xp.shape[0]
    cost = pl.CostEstimate(
        flops=2 * Np * D * Dout,
        transcendentals=Np,
        bytes_accessed=Np * D * 4 + D * Dout * 2 + Np * Dout * 2)
    out = pl.pallas_call(
        functools.partial(ln_linear_kernel, eps=eps),
        out_shape=jax.ShapeDtypeStruct((Np, Dout), out_dtype),
        grid=(Np // tm,),
        in_specs=[pl.BlockSpec((tm, D), lambda i: (i, 0)),
                  pl.BlockSpec((1, D), lambda i: (0, 0)),
                  pl.BlockSpec((1, D), lambda i: (0, 0)),
                  pl.BlockSpec((D, Dout), lambda i: (0, 0)),
                  pl.BlockSpec((1, Dout), lambda i: (0, 0))],
        out_specs=pl.BlockSpec((tm, Dout), lambda i: (i, 0)),
        compiler_params=pltpu.CompilerParams(
            dimension_semantics=("parallel",),
            vmem_limit_bytes=VMEM_LIMIT),
        cost_estimate=cost,
    )(xp, g.reshape(1, D), bln.reshape(1, D), w_bf16, b.reshape(1, Dout))
    return out[:n0]


def pallas_kv(g2d, wk_bf16, bk, wv_bf16, bv, out_dtype=jnp.bfloat16):
    N, D = g2d.shape
    tm = min(ROW_TILE, _round_up(N, 8))
    gp, n0 = _pad_rows(g2d, tm)
    Np = gp.shape[0]
    cost = pl.CostEstimate(
        flops=4 * Np * D * D,
        transcendentals=0,
        bytes_accessed=Np * D * 4 + 2 * D * D * 2 + 2 * Np * D * 2)
    k2d, v2d = pl.pallas_call(
        kv_kernel,
        out_shape=(jax.ShapeDtypeStruct((Np, D), out_dtype),
                   jax.ShapeDtypeStruct((Np, D), out_dtype)),
        grid=(Np // tm,),
        in_specs=[pl.BlockSpec((tm, D), lambda i: (i, 0)),
                  pl.BlockSpec((D, D), lambda i: (0, 0)),
                  pl.BlockSpec((1, D), lambda i: (0, 0)),
                  pl.BlockSpec((D, D), lambda i: (0, 0)),
                  pl.BlockSpec((1, D), lambda i: (0, 0))],
        out_specs=(pl.BlockSpec((tm, D), lambda i: (i, 0)),
                   pl.BlockSpec((tm, D), lambda i: (i, 0))),
        compiler_params=pltpu.CompilerParams(
            dimension_semantics=("parallel",),
            vmem_limit_bytes=VMEM_LIMIT),
        cost_estimate=cost,
    )(gp, wk_bf16, bk.reshape(1, D), wv_bf16, bv.reshape(1, D))
    return k2d[:n0], v2d[:n0]


def pallas_attention(q2d, k2d, v2d, mask3, wo_bf16, bo, x2d, *, B, Sq, Sk, heads):
    D = q2d.shape[1]
    dk = D // heads
    scale = 1.0 / (dk ** 0.5)
    # TODO(synk): for Sq not divisible by a nice tile, pad the per-batch Sq axis
    # instead of falling back to the full sequence.
    tq = _pick_divisor_tile(Sq, ROW_TILE, 8)
    nq = Sq // tq
    cost = pl.CostEstimate(
        flops=4 * B * Sq * Sk * D + 2 * B * Sq * D * D,
        transcendentals=B * heads * Sq * Sk,
        bytes_accessed=(q2d.size + k2d.size + v2d.size) * 2
                       + x2d.size * 4 + D * D * 2
                       + B * Sq * D * 4 + B * heads * Sq * Sk * 4)
    return pl.pallas_call(
        functools.partial(attention_kernel, heads=heads, scale=scale),
        out_shape=(jax.ShapeDtypeStruct((B * Sq, D), jnp.float32),
                   jax.ShapeDtypeStruct((B, heads, Sq, Sk), jnp.float32)),
        grid=(B, nq),
        in_specs=[pl.BlockSpec((tq, D), lambda b, qi: (b * nq + qi, 0)),
                  pl.BlockSpec((Sk, D), lambda b, qi: (b, 0)),      # resident per batch
                  pl.BlockSpec((Sk, D), lambda b, qi: (b, 0)),      # resident per batch
                  pl.BlockSpec((1, 1, Sk), lambda b, qi: (b, 0, 0)),
                  pl.BlockSpec((D, D), lambda b, qi: (0, 0)),
                  pl.BlockSpec((1, D), lambda b, qi: (0, 0)),
                  pl.BlockSpec((tq, D), lambda b, qi: (b * nq + qi, 0))],
        out_specs=(pl.BlockSpec((tq, D), lambda b, qi: (b * nq + qi, 0)),
                   pl.BlockSpec((1, heads, tq, Sk), lambda b, qi: (b, 0, qi, 0))),
        scratch_shapes=[pltpu.VMEM((tq, D), jnp.float32)],          # ctx accumulator
        compiler_params=pltpu.CompilerParams(
            dimension_semantics=("parallel", "parallel"),
            vmem_limit_bytes=VMEM_LIMIT),
        cost_estimate=cost,
    )(q2d, k2d, v2d, mask3, wo_bf16, bo.reshape(1, D), x2d)


def pallas_ffn(x2d, g, bln, w1_bf16, b1, w2_bf16, b2, eps=1e-6):
    N, D = x2d.shape
    F = w1_bf16.shape[1]
    tm = min(ROW_TILE, _round_up(N, 8))
    xp, n0 = _pad_rows(x2d, tm)
    Np = xp.shape[0]
    # keep W1 + W2 resident in VMEM (constant block index across row tiles)
    # whenever they fit in a fraction of the budget; else tile the d_ff axis.
    w_bytes = 2 * D * F * 2  # bf16
    tf = F if w_bytes <= VMEM_LIMIT // 4 else _pick_divisor_tile(F, 512, 128)
    nf = F // tf
    cost = pl.CostEstimate(
        flops=4 * Np * D * F,
        transcendentals=Np,
        bytes_accessed=2 * Np * D * 4 + 2 * D * F * 2 * (1 if nf == 1 else Np // tm)
                       + Np * D * 4)
    out = pl.pallas_call(
        functools.partial(ffn_kernel, eps=eps),
        out_shape=jax.ShapeDtypeStruct((Np, D), jnp.float32),
        grid=(Np // tm, nf),
        in_specs=[pl.BlockSpec((tm, D), lambda i, f: (i, 0)),
                  pl.BlockSpec((1, D), lambda i, f: (0, 0)),
                  pl.BlockSpec((1, D), lambda i, f: (0, 0)),
                  pl.BlockSpec((D, tf), lambda i, f: (0, f)),
                  pl.BlockSpec((1, tf), lambda i, f: (0, f)),
                  pl.BlockSpec((tf, D), lambda i, f: (f, 0)),
                  pl.BlockSpec((1, D), lambda i, f: (0, 0))],
        out_specs=pl.BlockSpec((tm, D), lambda i, f: (i, 0)),
        scratch_shapes=[pltpu.VMEM((tm, D), jnp.bfloat16),   # LN'd activations
                        pltpu.VMEM((tm, D), jnp.float32)],   # f32 accumulator
        compiler_params=pltpu.CompilerParams(
            dimension_semantics=("parallel", "arbitrary"),
            vmem_limit_bytes=VMEM_LIMIT),
        cost_estimate=cost,
    )(xp, g.reshape(1, D), bln.reshape(1, D),
      w1_bf16, b1.reshape(1, F), w2_bf16, b2.reshape(1, D))
    return out[:n0]


# ----------------------------- Layer forward -----------------------------

def transformer_encoder_layer(params, inputs, graph_embed, mol_mask=None,
                              text_mask=None):
    # TODO(synk): text_mask semantics live inside the externally-supplied
    # context_attn module; only the key-side (mol) mask is applied here.
    B, Sq, D = inputs.shape
    H = params["heads"]
    bf16 = jnp.bfloat16

    if graph_embed is not None:
        Sk = graph_embed.shape[1]
        x2d = inputs.reshape(B * Sq, D)
        g2d = graph_embed.reshape(B * Sk, D)

        # TODO(synk): in production, store the weights directly in bf16; these
        # casts are one-time wrapper ops for the f32 demo parameters.
        q2d = pallas_ln_linear(x2d, params["ln2_g"], params["ln2_b"],
                               params["wq"].astype(bf16), params["bq"])
        k2d, v2d = pallas_kv(g2d, params["wk"].astype(bf16), params["bk"],
                             params["wv"].astype(bf16), params["bv"])

        if mol_mask is not None:
            mask3 = mol_mask.astype(jnp.float32).reshape(B, 1, Sk)
        else:
            mask3 = jnp.ones((B, 1, Sk), jnp.float32)

        # fused multi-head attention + single full-width output projection + residual
        out2d, context_attn = pallas_attention(
            q2d, k2d, v2d, mask3, params["wo"].astype(bf16), params["bo"], x2d,
            B=B, Sq=Sq, Sk=Sk, heads=H)
    else:
        out2d = inputs.reshape(B * Sq, D)
        context_attn = None

    # fused PositionwiseFeedForward: x + W2(relu(W1(LN(x))))
    y2d = pallas_ffn(out2d, params["ln1_g"], params["ln1_b"],
                     params["w1"].astype(bf16), params["b1"],
                     params["w2"].astype(bf16), params["b2"])

    return y2d.reshape(B, Sq, D), context_attn


# ----------------------------- Pure-JAX reference -----------------------------

def reference_forward(params, inputs, graph_embed, mol_mask=None):
    def ln(x, g, b, eps=1e-6):
        m = x.mean(-1, keepdims=True)
        v = ((x - m) ** 2).mean(-1, keepdims=True)
        return (x - m) / jnp.sqrt(v + eps) * g + b

    B, Sq, D = inputs.shape
    H = params["heads"]
    dk = D // H
    Sk = graph_embed.shape[1]

    xn = ln(inputs, params["ln2_g"], params["ln2_b"])
    q = xn @ params["wq"] + params["bq"]
    k = graph_embed @ params["wk"] + params["bk"]
    v = graph_embed @ params["wv"] + params["bv"]
    qh = q.reshape(B, Sq, H, dk).transpose(0, 2, 1, 3)
    kh = k.reshape(B, Sk, H, dk).transpose(0, 2, 1, 3)
    vh = v.reshape(B, Sk, H, dk).transpose(0, 2, 1, 3)
    sc = jnp.einsum("bhqd,bhkd->bhqk", qh, kh) / jnp.sqrt(dk)
    if mol_mask is not None:
        sc = sc + jnp.where(mol_mask[:, None, None, :] > 0, 0.0, -1e9)
    p = jax.nn.softmax(sc, axis=-1)
    ctx = jnp.einsum("bhqk,bhkd->bhqd", p, vh).transpose(0, 2, 1, 3).reshape(B, Sq, D)
    out = ctx @ params["wo"] + params["bo"] + inputs
    ff = ln(out, params["ln1_g"], params["ln1_b"])
    ff = jnp.maximum(ff @ params["w1"] + params["b1"], 0.0)
    y = ff @ params["w2"] + params["b2"] + out
    return y, p


# ----------------------------- Params & main -----------------------------

def init_params(key, d_model, heads, d_ff):
    ks = jax.random.split(key, 6)
    s = 0.05
    f32 = jnp.float32
    return {
        "heads": heads,
        "wq": jax.random.normal(ks[0], (d_model, d_model), f32) * s,
        "wk": jax.random.normal(ks[1], (d_model, d_model), f32) * s,
        "wv": jax.random.normal(ks[2], (d_model, d_model), f32) * s,
        "wo": jax.random.normal(ks[3], (d_model, d_model), f32) * s,
        "bq": jnp.zeros((d_model,), f32),
        "bk": jnp.zeros((d_model,), f32),
        "bv": jnp.zeros((d_model,), f32),
        "bo": jnp.zeros((d_model,), f32),
        "w1": jax.random.normal(ks[4], (d_model, d_ff), f32) * s,
        "b1": jnp.zeros((d_ff,), f32),
        "w2": jax.random.normal(ks[5], (d_ff, d_model), f32) * s,
        "b2": jnp.zeros((d_model,), f32),
        "ln1_g": jnp.ones((d_model,), f32),
        "ln1_b": jnp.zeros((d_model,), f32),
        "ln2_g": jnp.ones((d_model,), f32),
        "ln2_b": jnp.zeros((d_model,), f32),
    }


if __name__ == "__main__":
    B, Sq, Sk = 2, 8, 8
    d_model, heads, d_ff = 32, 4, 64

    key = jax.random.PRNGKey(0)
    k_in, k_graph, k_par = jax.random.split(key, 3)
    inputs = jax.random.normal(k_in, (B, Sq, d_model), jnp.float32)
    graph_embed = jax.random.normal(k_graph, (B, Sk, d_model), jnp.float32)
    # mask out the last two graph positions of the second batch element
    mol_mask = jnp.ones((B, Sk), jnp.float32).at[1, -2:].set(0.0)

    params = init_params(k_par, d_model, heads, d_ff)

    out, attn = transformer_encoder_layer(params, inputs, graph_embed,
                                          mol_mask=mol_mask, text_mask=None)
    out = jax.block_until_ready(out)
    attn = jax.block_until_ready(attn)

    ref_out, ref_attn = reference_forward(params, inputs, graph_embed, mol_mask)
    # tolerances account for the bf16 MXU inputs (f32 accumulation, f32 softmax/LN)
    assert jnp.allclose(out, ref_out, rtol=2e-2, atol=2e-2), "output mismatch"
    assert jnp.allclose(attn, ref_attn, rtol=2e-2, atol=2e-2), "attn mismatch"

    print("KERNEL_OK")
</pallas_src>

<mosaic_0001>
module attributes {stable_mosaic.version = 11 : i64} {
  func.func @ln_linear_kernel(%arg0: i32, %arg1: memref<16x32xf32, #tpu.memory_space<vmem>>, %arg2: memref<1x32xf32, #tpu.memory_space<vmem>>, %arg3: memref<1x32xf32, #tpu.memory_space<vmem>>, %arg4: memref<32x32xbf16, #tpu.memory_space<vmem>>, %arg5: memref<1x32xf32, #tpu.memory_space<vmem>>, %arg6: memref<16x32xbf16, #tpu.memory_space<vmem>>) attributes {dimension_semantics = [#tpu.dimension_semantics<parallel>], iteration_bounds = array<i64: 1>, scalar_prefetch = 0 : i64, scratch_operands = 0 : i64, tpu.core_type = #tpu.core_type<tc>, window_params = [{transform_indices = @transform_0, window_bounds = array<i64: 16, 32>}, {pipeline_mode = #tpu.pipeline_mode<synchronous>, transform_indices = @transform_1, window_bounds = array<i64: 1, 32>}, {pipeline_mode = #tpu.pipeline_mode<synchronous>, transform_indices = @transform_2, window_bounds = array<i64: 1, 32>}, {pipeline_mode = #tpu.pipeline_mode<synchronous>, transform_indices = @transform_3, window_bounds = array<i64: 32, 32>}, {pipeline_mode = #tpu.pipeline_mode<synchronous>, transform_indices = @transform_4, window_bounds = array<i64: 1, 32>}, {transform_indices = @transform_5, window_bounds = array<i64: 16, 32>}]} {
    %c0 = arith.constant 0 : index
    %c0_0 = arith.constant 0 : index
    %0 = vector.load %arg1[%c0, %c0_0] : memref<16x32xf32, #tpu.memory_space<vmem>>, vector<16x32xf32>
    %cst = arith.constant dense<0.000000e+00> : vector<16xf32>
    %1 = vector.multi_reduction <add>, %0, %cst [1] : vector<16x32xf32> to vector<16xf32>
    %2 = vector.shape_cast %1 : vector<16xf32> to vector<16x1xf32>
    %cst_1 = arith.constant 3.200000e+01 : f32
    %3 = vector.broadcast %cst_1 : f32 to vector<16x1xf32>
    %4 = arith.divf %2, %3 : vector<16x1xf32>
    %5 = vector.broadcast %4 : vector<16x1xf32> to vector<16x32xf32>
    %6 = arith.subf %0, %5 : vector<16x32xf32>
    %7 = arith.mulf %6, %6 : vector<16x32xf32>
    %cst_2 = arith.constant dense<0.000000e+00> : vector<16xf32>
    %8 = vector.multi_reduction <add>, %7, %cst_2 [1] : vector<16x32xf32> to vector<16xf32>
    %9 = vector.shape_cast %8 : vector<16xf32> to vector<16x1xf32>
    %cst_3 = arith.constant 3.200000e+01 : f32
    %10 = vector.broadcast %cst_3 : f32 to vector<16x1xf32>
    %11 = arith.divf %9, %10 : vector<16x1xf32>
    %12 = vector.broadcast %4 : vector<16x1xf32> to vector<16x32xf32>
    %13 = arith.subf %0, %12 : vector<16x32xf32>
    %cst_4 = arith.constant 9.99999997E-7 : f32
    %14 = vector.broadcast %cst_4 : f32 to vector<16x1xf32>
    %15 = arith.addf %11, %14 : vector<16x1xf32>
    %16 = math.rsqrt %15 : vector<16x1xf32>
    %17 = vector.broadcast %16 : vector<16x1xf32> to vector<16x32xf32>
    %18 = arith.mulf %13, %17 : vector<16x32xf32>
    %c0_5 = arith.constant 0 : index
    %c0_6 = arith.constant 0 : index
    %19 = vector.load %arg2[%c0_5, %c0_6] : memref<1x32xf32, #tpu.memory_space<vmem>>, vector<1x32xf32>
    %20 = vector.broadcast %19 : vector<1x32xf32> to vector<16x32xf32>
    %21 = arith.mulf %18, %20 : vector<16x32xf32>
    %c0_7 = arith.constant 0 : index
    %c0_8 = arith.constant 0 : index
    %22 = vector.load %arg3[%c0_7, %c0_8] : memref<1x32xf32, #tpu.memory_space<vmem>>, vector<1x32xf32>
    %23 = vector.broadcast %22 : vector<1x32xf32> to vector<16x32xf32>
    %24 = arith.addf %21, %23 : vector<16x32xf32>
    %25 = arith.truncf %24 : vector<16x32xf32> to vector<16x32xbf16>
    %c0_9 = arith.constant 0 : index
    %c0_10 = arith.constant 0 : index
    %26 = vector.load %arg4[%c0_9, %c0_10] : memref<32x32xbf16, #tpu.memory_space<vmem>>, vector<32x32xbf16>
    %cst_11 = arith.constant dense<0.000000e+00> : vector<16x32xf32>
    %27 = tpu.matmul %25, %26, %cst_11 {dimension_numbers = #tpu.dot_dimension_numbers<[1], [0], [0], [1], [0, 0, 1, 1], [], []>} : vector<16x32xbf16>, vector<32x32xbf16>, vector<16x32xf32> -> vector<16x32xf32>
    %c0_12 = arith.constant 0 : index
    %c0_13 = arith.constant 0 : index
    %28 = vector.load %arg5[%c0_12, %c0_13] : memref<1x32xf32, #tpu.memory_space<vmem>>, vector<1x32xf32>
    %29 = vector.broadcast %28 : vector<1x32xf32> to vector<16x32xf32>
    %30 = arith.addf %27, %29 : vector<16x32xf32>
    %31 = arith.truncf %30 : vector<16x32xf32> to vector<16x32xbf16>
    %c0_14 = arith.constant 0 : index
    %c0_15 = arith.constant 0 : index
    %32 = vector.load %arg6[%c0_14, %c0_15] : memref<16x32xbf16, #tpu.memory_space<vmem>>, vector<16x32xbf16>
    tpu.vector_store %arg6[%c0_14, %c0_15], %31 {strides = array<i32>} : memref<16x32xbf16, #tpu.memory_space<vmem>>, vector<16x32xbf16>,
    return
  }
  func.func @transform_0(%arg0: i32) -> (i32, i32) {
    %c0_i32 = arith.constant 0 : i32
    %c0_i32_0 = arith.constant 0 : i32
    return %arg0, %c0_i32 : i32, i32
  }
  func.func @transform_1(%arg0: i32) -> (i32, i32) {
    %c0_i32 = arith.constant 0 : i32
    %c0_i32_0 = arith.constant 0 : i32
    %c0_i32_1 = arith.constant 0 : i32
    return %c0_i32, %c0_i32_0 : i32, i32
  }
  func.func @transform_2(%arg0: i32) -> (i32, i32) {
    %c0_i32 = arith.constant 0 : i32
    %c0_i32_0 = arith.constant 0 : i32
    %c0_i32_1 = arith.constant 0 : i32
    return %c0_i32, %c0_i32_0 : i32, i32
  }
  func.func @transform_3(%arg0: i32) -> (i32, i32) {
    %c0_i32 = arith.constant 0 : i32
    %c0_i32_0 = arith.constant 0 : i32
    %c0_i32_1 = arith.constant 0 : i32
    return %c0_i32, %c0_i32_0 : i32, i32
  }
  func.func @transform_4(%arg0: i32) -> (i32, i32) {
    %c0_i32 = arith.constant 0 : i32
    %c0_i32_0 = arith.constant 0 : i32
    %c0_i32_1 = arith.constant 0 : i32
    return %c0_i32, %c0_i32_0 : i32, i32
  }
  func.func @transform_5(%arg0: i32) -> (i32, i32) {
    %c0_i32 = arith.constant 0 : i32
    %c0_i32_0 = arith.constant 0 : i32
    return %arg0, %c0_i32 : i32, i32
  }
}

</mosaic_0001>

<llo_original>
// kernel: tpu_custom_call.1
$region0: #{tpu_custom_call.1}
  #allocation0 [shape = 'u32[]', space=smem, size = 0x4, offset = 0x4, fixed_abs, tag = 'smem constant byte address 0x4 - core index']
  #allocation1 [shape = 'u32[144,128]{1,0:T(1,128)}', space=vmem, size = 0x12000, scoped, tag = 'internal scratch']
  %s0 = inlined_call_operand.hbm [shape: f32[16,32], index: 0, kind: input, shape index: {}]
  %s1 = inlined_call_operand.vmem [shape: f32[1,32], index: 1, kind: input, shape index: {}]
  %s2 = inlined_call_operand.vmem [shape: f32[1,32], index: 2, kind: input, shape index: {}]
  %s3 = inlined_call_operand.hbm [shape: bf16[32,32], index: 3, kind: input, shape index: {}]
  %s4 = inlined_call_operand.vmem [shape: f32[1,32], index: 4, kind: input, shape index: {}]
  %s5 = inlined_call_operand.hbm [shape: bf16[16,32], index: 5, kind: output, shape index: {}]
  %s6 = sld [smem:[#allocation0]]
  $region38: #{tpu_custom_call.1} parent=0
    _
  %s8 = ssub.s32 1, %s6
  %s9 = scalar_select 0, %s8, %s6
  $region1: #{tpu_custom_call.1} parent=0
    #allocation2 [shape = 'u8[8192]{0}', space=vmem, size = 0x2000, scoped, tag = 'input window, operand 0, single buffered']
    #allocation3 [shape = 's32[1]{0}', space=sflag, size = 0x4, scoped, tag = 'scoped memory for tpu_custom_call.1']
    #allocation4 [shape = 's32[1]{0}', space=sflag, size = 0x4, scoped, tag = 'scoped memory for tpu_custom_call.1']
    #allocation5 [shape = 'u8[8192]{0}', space=vmem, size = 0x2000, scoped, tag = 'input window, operand 3, single buffered']
    #allocation6 [shape = 's32[1]{0}', space=sflag, size = 0x4, scoped, tag = 'scoped memory for tpu_custom_call.1']
    #allocation7 [shape = 'u8[4096]{0}', space=vmem, size = 0x1000, scoped, tag = 'output window, operand 0, single buffered']
    %10 = vsyncpa [#allocation3], 0
    %11 = vsyncpa [#allocation6], 0
    %12 = vsyncpa [#allocation4], 0
    // Predicated region
    $region2: #{tpu_custom_call.1} parent=1 // pred_check
      _
    $region3: #{tpu_custom_call.1} parent=1 // pred_check_branch
      %14 = sbr.rel (0) target = $region5
    $region4: #{tpu_custom_call.1} parent=1 // pred_region
      %s16 = ssub.s32 256, 256
      %17 = vsyncadd [#allocation3], %s16
      %s18 = sshll.u32 [#allocation2], 4
      %s19 = int_to_ptr.vmem [resolvable:$true] %s18
      %24 = dma.hbm_to_vmem [thread:$0]  %s0, 256, %s19, [#allocation3], 128, 128, 8
    $region5: #{tpu_custom_call.1} parent=1 // pred_fallthru
      _
    // Predicated region
    $region6: #{tpu_custom_call.1} parent=1 // pred_check
      _
    $region7: #{tpu_custom_call.1} parent=1 // pred_check_branch
      %26 = sbr.rel (0) target = $region9
    $region8: #{tpu_custom_call.1} parent=1 // pred_region
      _
    $region9: #{tpu_custom_call.1} parent=1 // pred_fallthru
      _
    // Predicated region
    $region10: #{tpu_custom_call.1} parent=1 // pred_check
      _
    $region11: #{tpu_custom_call.1} parent=1 // pred_check_branch
      %28 = sbr.rel (0) target = $region13
    $region12: #{tpu_custom_call.1} parent=1 // pred_region
      _
    $region13: #{tpu_custom_call.1} parent=1 // pred_fallthru
      _
    // Predicated region
    $region14: #{tpu_custom_call.1} parent=1 // pred_check
      _
    $region15: #{tpu_custom_call.1} parent=1 // pred_check_branch
      %30 = sbr.rel (0) target = $region17
    $region16: #{tpu_custom_call.1} parent=1 // pred_region
      %s32 = ssub.s32 256, 256
      %33 = vsyncadd [#allocation6], %s32
      %s34 = sshll.u32 [#allocation5], 4
      %s35 = int_to_ptr.vmem [resolvable:$true] %s34
      %40 = dma.hbm_to_vmem [thread:$0]  %s3, 256, %s35, [#allocation6], 64, 64, 4
    $region17: #{tpu_custom_call.1} parent=1 // pred_fallthru
      _
    // Predicated region
    $region18: #{tpu_custom_call.1} parent=1 // pred_check
      _
    $region19: #{tpu_custom_call.1} parent=1 // pred_check_branch
      %42 = sbr.rel (0) target = $region21
    $region20: #{tpu_custom_call.1} parent=1 // pred_region
      _
    $region21: #{tpu_custom_call.1} parent=1 // pred_fallthru
      _
    // Predicated region
    $region22: #{tpu_custom_call.1} parent=1 // pred_check
      _
    $region23: #{tpu_custom_call.1} parent=1 // pred_check_branch
      %44 = sbr.rel (0) target = $region25
    $region24: #{tpu_custom_call.1} parent=1 // pred_region
      %45 = dma.done [#allocation3], 256
    $region25: #{tpu_custom_call.1} parent=1 // pred_fallthru
      _
    // Predicated region
    $region26: #{tpu_custom_call.1} parent=1 // pred_check
      _
    $region27: #{tpu_custom_call.1} parent=1 // pred_check_branch
      %47 = sbr.rel (0) target = $region29
    $region28: #{tpu_custom_call.1} parent=1 // pred_region
      %48 = dma.done [#allocation6], 256
    $region29: #{tpu_custom_call.1} parent=1 // pred_fallthru
      _
    %v50 = vld [vmem:[#allocation2] sm:$0xff]
    %v51 = vld [vmem:[#allocation2 + $0x8] sm:$0xff]
    %vm52 = vcmask 261120
    %v53 = vsel %vm52, %v50, 0.0
    %54 = vadd.xlane.f32.xlu0 %v53
    %v55 = vpop.xlane.xlu0 %54
    %v56 = vsel %vm52, %v51, 0.0
    %57 = vadd.xlane.f32.xlu0 %v56
    %v58 = vpop.xlane.xlu0 %57
    %v59 = vrcp.pop 32.0
    %v60 = vmul.f32 %v55, %v59
    %v61 = vmul.f32 %v58, %v59
    %v62 = vsub.f32 %v50, %v60
    %v63 = vsub.f32 %v51, %v61
    %v64 = vmul.f32 %v62, %v62
    %v65 = vmul.f32 %v63, %v63
    %v66 = vsel %vm52, %v64, 0.0
    %67 = vadd.xlane.f32.xlu0 %v66
    %v68 = vpop.xlane.xlu0 %67
    %v69 = vsel %vm52, %v65, 0.0
    %70 = vadd.xlane.f32.xlu0 %v69
    %v71 = vpop.xlane.xlu0 %70
    %v72 = vmul.f32 %v68, %v59
    %v73 = vmul.f32 %v71, %v59
    %v74 = vadd.f32 %v72, 1e-06
    %v75 = vadd.f32 %v73, 1e-06
    %v76 = vrsqrt.pop %v74
    %v77 = vrsqrt.pop %v75
    %v78 = vmul.f32 %v62, %v76
    %v79 = vmul.f32 %v63, %v77
    %v80 = vld [vmem:[%s1] sm:$0x1]
    %v82 = vlaneseq
    %v83 = vshrl.u32 %v82, 7
    %v84 = vsub.s32 0, %v83
    %v85 = vrot.slane %v80, %v84
    %v87 = vmul.f32 %v78, %v85
    %v88 = vmul.f32 %v79, %v85
    %v89 = vld [vmem:[%s2] sm:$0x1]
    %v91 = vlaneseq
    %v92 = vshrl.u32 %v91, 7
    %v93 = vsub.s32 0, %v92
    %v94 = vrot.slane %v89, %v93
    %v96 = vadd.f32 %v87, %v94
    %v97 = vadd.f32 %v88, %v94
    %v98 = vpack.c.bf16 %v97, %v96
    %v99 = vld [vmem:[#allocation5] sm:$0xf]
    %v100 = vld [vmem:[#allocation5 + $0x4] sm:$0xf]
    %v101 = vld [vmem:[#allocation5 + $0x8] sm:$0xf]
    %v102 = vld [vmem:[#allocation5 + $0xc] sm:$0xf]
    %v103 = vld [vmem:[%s4] sm:$0x1]
    %v105 = vlaneseq
    %v106 = vshrl.u32 %v105, 7
    %v107 = vsub.s32 0, %v106
    %v108 = vrot.slane %v103, %v107
    %v114 = vunpack.c.l.b16 %v99
    %v115 = vunpack.c.l.b16 %v100
    %v116 = vunpack.c.l.b16 %v101
    %v117 = vunpack.c.l.b16 %v102
    %v118 = vpack.c.b16 %v115, %v114
    %v119 = vpack.c.b16 %v117, %v116
    %v123 = vsel %vm52, %v98, 0
    %125 = vmatprep.subr.bf16.mxu0 0
    %126 = vmatpush1.bf16.msra.mxu0 0
    %127 = vmatprep.subr.bf16.mxu0 0
    %128 = vmatpush1.bf16.msra.mxu0 0
    %129 = vmatprep.subr.bf16.mxu0 0
    %130 = vmatpush1.bf16.msra.mxu0 0
    %131 = vmatprep.subr.bf16.mxu0 0
    %132 = vmatpush1.bf16.msra.mxu0 0
    %133 = vmatprep.subr.bf16.mxu0 0
    %134 = vmatpush1.bf16.msra.mxu0 0
    %135 = vmatprep.subr.bf16.mxu0 0
    %136 = vmatpush1.bf16.msra.mxu0 0
    %137 = vmatprep.subr.bf16.mxu0 0
    %138 = vmatpush1.bf16.msra.mxu0 %v119
    %139 = vmatprep.subr.bf16.mxu0 0
    %140 = vmatpush1.bf16.msra.mxu0 %v118
    %141 = vmatprep.subr.bf16.mxu0 0
    %142 = vmatpush2.bf16.msra.mxu0 0
    %143 = vmatprep.subr.bf16.mxu0 0
    %144 = vmatpush2.bf16.msra.mxu0 0
    %145 = vmatprep.subr.bf16.mxu0 0
    %146 = vmatpush2.bf16.msra.mxu0 0
    %147 = vmatprep.subr.bf16.mxu0 0
    %148 = vmatpush2.bf16.msra.mxu0 0
    %149 = vmatprep.subr.bf16.mxu0 0
    %150 = vmatpush2.bf16.msra.mxu0 0
    %151 = vmatprep.subr.bf16.mxu0 0
    %152 = vmatpush2.bf16.msra.mxu0 0
    %153 = vmatprep.subr.bf16.mxu0 0
    %154 = vmatpush2.bf16.msra.mxu0 0
    %155 = vmatprep.subr.bf16.mxu0 0
    %156 = vmatpush2.bf16.msra.mxu0 0
    %157 = vmatprep.mubr.bf16.mxu0 0
    %158 = vmatmul.mubr.bf16.gmra.mxu0 %v123
    %v159 = vpop.f32.mrf.mxu0
    %v160 = vadd.f32 %v108, %v159
    %v161 = vpop.f32.mrf.mxu0
    %v162 = vpop.f32.mrf.mxu0
    %v163 = vadd.f32 %v108, %v162
    %v164 = vpop.f32.mrf.mxu0
    %165 = vdwg.mxu0
    %v166 = vpack.c.bf16 %v163, %v160
    %v168 = vunpack.c.l.b16 %v166
    %v169 = vunpack.c.h.b16 %v166
    %v170 = vpack.c.b16 %v168, %v168
    %v171 = vpack.c.b16 %v169, %v169
    %vm174 = vcmask 257024
    %175 = vst.msk [vmem:[#allocation7] sm:$0xf] %vm174, %v170
    %176 = vst.msk [vmem:[#allocation7 + $0x4] sm:$0xf] %vm174, %v171
    // Predicated region
    $region30: #{tpu_custom_call.1} parent=1 // pred_check
      _
    $region31: #{tpu_custom_call.1} parent=1 // pred_check_branch
      %178 = sbr.rel (0) target = $region33
    $region32: #{tpu_custom_call.1} parent=1 // pred_region
      %s180 = ssub.s32 128, 128
      %181 = vsyncadd [#allocation4], %s180
      %s182 = sshll.u32 [#allocation7], 4
      %s183 = int_to_ptr.vmem [resolvable:$true] %s182
      %188 = dma.vmem_to_hbm [thread:$0]  %s183, 128, %s5, [#allocation4], 64, 64, 4
    $region33: #{tpu_custom_call.1} parent=1 // pred_fallthru
      _
    // Predicated region
    $region34: #{tpu_custom_call.1} parent=1 // pred_check
      _
    $region35: #{tpu_custom_call.1} parent=1 // pred_check_branch
      %190 = sbr.rel (0) target = $region37
    $region36: #{tpu_custom_call.1} parent=1 // pred_region
      %191 = dma.done [#allocation4], 128
    $region37: #{tpu_custom_call.1} parent=1 // pred_fallthru
      _
    %192 = vsyncpa [#allocation3], 1
    %193 = vsyncpa [#allocation6], 1
    %194 = vsyncpa [#allocation4], 1

</llo_original>
